<compile_context>
chip_gen: v7x
topology: tpu7x:2x2x1
jax: 0.10.0
libtpu: 0.0.40
codegen_flags: <defaults>
</compile_context>

<pallas_src>
import jax
import jax.numpy as jnp
from jax.experimental import pallas as pl
from jax.experimental.pallas import tpu as pltpu


def _round_up(n, m):
    return ((n + m - 1) // m) * m


# --------------------------------------------------------------------------- #
# Kernel                                                                      #
# --------------------------------------------------------------------------- #
def mlp_kernel(x_ref, w1_ref, b1_ref, w2_ref, b2_ref, o_ref):
    # Cast the streamed f32 x tile to the weight dtype (bf16) in-register for
    # the MXU; accumulate in f32.
    x = x_ref[...].astype(w1_ref.dtype)
    h = jnp.dot(x, w1_ref[...], preferred_element_type=jnp.float32)
    # Bias + ReLU in f32 on the VPU (v5e has no bf16 VPU path).
    h = jnp.maximum(h + b1_ref[...], 0.0)
    # fc2: cast activations to bf16 only as the MXU operand.
    out = jnp.dot(h.astype(w2_ref.dtype), w2_ref[...],
                  preferred_element_type=jnp.float32)
    o_ref[...] = (out + b2_ref[...]).astype(o_ref.dtype)


# --------------------------------------------------------------------------- #
# Parameter prep (run ONCE, outside the jitted forward)                       #
# --------------------------------------------------------------------------- #
def prepare_params(w1, b1, w2, b2, compute_dtype=jnp.bfloat16):
    """Pad the hidden dim to a multiple of 128 (exact: padded W1 cols / b1 /
    W2 rows are zero, so padded hidden units are 0 pre- and post-ReLU and
    contribute nothing to fc2) and cast weights to the MXU dtype once."""
    in_f, hid = w1.shape
    assert w2.shape[0] == hid
    out_f = w2.shape[1]
    hid_p = _round_up(hid, 128)

    w1p = jnp.pad(w1, ((0, 0), (0, hid_p - hid))).astype(compute_dtype)
    b1p = jnp.pad(b1, ((0, hid_p - hid),)).reshape(1, hid_p).astype(jnp.float32)
    w2p = jnp.pad(w2, ((0, hid_p - hid), (0, 0))).astype(compute_dtype)
    b2p = b2.reshape(1, out_f).astype(jnp.float32)
    return w1p, b1p, w2p, b2p


# --------------------------------------------------------------------------- #
# Forward wrapper                                                             #
# --------------------------------------------------------------------------- #
def _vmem_physical_bytes():
    try:
        info = pltpu.get_tpu_info()
        cap = getattr(info, "vmem_capacity_bytes", None)
        if cap:
            return int(cap)
    except Exception:
        pass
    return 64 * 1024 * 1024  # conservative default (v7x per-TC VMEM)


def _pick_block_rows(B):
    if B < 256:
        return B  # tiny batch: single tile (launch overhead dominates anyway)
    # >= 4 grid steps, multiple of 16 (bf16 sublane packing), capped at 512.
    return min(512, _round_up(pl.cdiv(B, 4), 16))


def _const_spec(shape):
    """BlockSpec for a grid-invariant operand, single-buffered if supported."""
    try:
        return pl.BlockSpec(shape, lambda i: (0, 0), pipeline_mode=pl.Buffered(1))
    except Exception:
        return pl.BlockSpec(shape, lambda i: (0, 0))


def simple_neuranet_forward(x, w1p, b1p, w2p, b2p, *, block_rows=None,
                            out_dtype=None):
    """x: [B, in_f] (any float dtype); params from prepare_params()."""
    B, in_f = x.shape
    assert w1p.shape[0] == in_f
    hid_p = w1p.shape[1]
    out_f = w2p.shape[1]
    out_dtype = out_dtype or x.dtype

    if block_rows is None:
        block_rows = _pick_block_rows(B)
    assert block_rows == B or block_rows % 16 == 0
    grid = (pl.cdiv(B, block_rows),)  # ragged last block handled by Pallas

    x_it = jnp.dtype(x.dtype).itemsize
    w_it = jnp.dtype(w1p.dtype).itemsize
    o_it = jnp.dtype(out_dtype).itemsize

    # VMEM budget: double-buffered x/out tiles, single-buffered weights/biases,
    # headroom for the f32 intermediate.
    # TODO(synk): once (in_f*hid_p + hid_p*out_f)*w_it no longer fits ~85% of
    # VMEM (v7x hits this at half the layer size of v5e/v6e), add hidden/out
    # grid axes marked "arbitrary" with an f32 accumulator + pl.when
    # init/finalize instead of keeping the weights fully resident.
    vmem_need = (
        2 * block_rows * in_f * x_it                  # x tiles (double-buffered)
        + 2 * block_rows * out_f * o_it               # out tiles (double-buffered)
        + (in_f * hid_p + hid_p * out_f) * w_it       # weights (single-buffered)
        + (hid_p + out_f) * 4                         # biases
        + 2 * block_rows * hid_p * 4                  # f32 intermediate headroom
    )
    vmem_cap = int(0.85 * _vmem_physical_bytes())     # leave Mosaic scratch room
    vmem_limit = int(min(max(2 * vmem_need, 32 * 1024 * 1024), vmem_cap))

    flops = 2 * B * in_f * hid_p + 2 * B * hid_p * out_f
    bytes_accessed = int(
        B * in_f * x_it + (in_f * hid_p + hid_p * out_f) * w_it
        + (hid_p + out_f) * 4 + B * out_f * o_it)

    return pl.pallas_call(
        mlp_kernel,
        out_shape=jax.ShapeDtypeStruct((B, out_f), out_dtype),
        grid_spec=pltpu.PrefetchScalarGridSpec(
            num_scalar_prefetch=0,
            grid=grid,
            in_specs=[
                pl.BlockSpec((block_rows, in_f), lambda i: (i, 0)),  # x tile
                _const_spec((in_f, hid_p)),                          # W1 (resident)
                _const_spec((1, hid_p)),                             # b1
                _const_spec((hid_p, out_f)),                         # W2 (resident)
                _const_spec((1, out_f)),                             # b2
            ],
            out_specs=pl.BlockSpec((block_rows, out_f), lambda i: (i, 0)),
        ),
        compiler_params=pltpu.CompilerParams(
            dimension_semantics=("parallel",),
            vmem_limit_bytes=vmem_limit,
        ),
        cost_estimate=pl.CostEstimate(
            flops=flops, transcendentals=0, bytes_accessed=bytes_accessed),
    )(x, w1p, b1p, w2p, b2p)


# --------------------------------------------------------------------------- #
# References                                                                  #
# --------------------------------------------------------------------------- #
def reference_forward(x, w1, b1, w2, b2):
    h = jnp.maximum(x @ w1 + b1, 0.0)
    return h @ w2 + b2


def reference_forward_bf16(x, w1, b1, w2, b2):
    xb, w1b, w2b = (a.astype(jnp.bfloat16) for a in (x, w1, w2))
    h = jnp.maximum(jnp.dot(xb, w1b, preferred_element_type=jnp.float32) + b1, 0.0)
    return jnp.dot(h.astype(jnp.bfloat16), w2b,
                   preferred_element_type=jnp.float32) + b2


# --------------------------------------------------------------------------- #
# Demo / self-test                                                            #
# --------------------------------------------------------------------------- #
if __name__ == "__main__":
    # params = [[in_features, hidden], [hidden, out_features]]
    in_features, hidden, out_features = 32, 64, 16

    key = jax.random.PRNGKey(0)
    kx, kw1, kb1, kw2, kb2, kx2 = jax.random.split(key, 6)

    # Deterministic parameter init (uniform, like PyTorch Linear's default bound).
    bound1 = 1.0 / (in_features ** 0.5)
    bound2 = 1.0 / (hidden ** 0.5)
    w1 = jax.random.uniform(kw1, (in_features, hidden), jnp.float32, -bound1, bound1)
    b1 = jax.random.uniform(kb1, (hidden,), jnp.float32, -bound1, bound1)
    w2 = jax.random.uniform(kw2, (hidden, out_features), jnp.float32, -bound2, bound2)
    b2 = jax.random.uniform(kb2, (out_features,), jnp.float32, -bound2, bound2)

    # One-time parameter prep (outside the jitted forward).
    w1p, b1p, w2p, b2p = prepare_params(w1, b1, w2, b2)

    forward = jax.jit(simple_neuranet_forward)

    def check(batch, kseed):
        x = jax.random.normal(kseed, (batch, in_features), jnp.float32)
        out = jax.block_until_ready(forward(x, w1p, b1p, w2p, b2p))
        assert out.shape == (batch, out_features)
        # f32 module-semantics reference (loose tolerance: bf16 matmul operands).
        ref_f32 = reference_forward(x, w1, b1, w2, b2)
        assert jnp.allclose(out, ref_f32, atol=5e-2, rtol=5e-2), "mismatch vs f32 ref"
        # bf16-emulated reference (tight tolerance: validates the kernel itself).
        ref_bf16 = reference_forward_bf16(x, w1, b1, w2, b2)
        assert jnp.allclose(out, ref_bf16, atol=1e-3, rtol=1e-3), "mismatch vs bf16 ref"

    # Small batch (single tile) and a ragged multi-tile batch (exercises the
    # cdiv grid + masked last block + pipelined path).
    check(8, kx)
    check(333, kx2)

    print("KERNEL_OK")
</pallas_src>

<mosaic_0001>
module attributes {stable_mosaic.version = 11 : i64} {
  func.func @mlp_kernel(%arg0: i32, %arg1: memref<8x32xf32, #tpu.memory_space<vmem>>, %arg2: memref<32x128xbf16, #tpu.memory_space<vmem>>, %arg3: memref<1x128xf32, #tpu.memory_space<vmem>>, %arg4: memref<128x16xbf16, #tpu.memory_space<vmem>>, %arg5: memref<1x16xf32, #tpu.memory_space<vmem>>, %arg6: memref<8x16xf32, #tpu.memory_space<vmem>>) attributes {dimension_semantics = [#tpu.dimension_semantics<parallel>], iteration_bounds = array<i64: 1>, scalar_prefetch = 0 : i64, scratch_operands = 0 : i64, tpu.core_type = #tpu.core_type<tc>, window_params = [{transform_indices = @transform_0, window_bounds = array<i64: 8, 32>}, {pipeline_mode = #tpu.pipeline_mode<synchronous>, transform_indices = @transform_1, window_bounds = array<i64: 32, 128>}, {pipeline_mode = #tpu.pipeline_mode<synchronous>, transform_indices = @transform_2, window_bounds = array<i64: 1, 128>}, {pipeline_mode = #tpu.pipeline_mode<synchronous>, transform_indices = @transform_3, window_bounds = array<i64: 128, 16>}, {pipeline_mode = #tpu.pipeline_mode<synchronous>, transform_indices = @transform_4, window_bounds = array<i64: 1, 16>}, {transform_indices = @transform_5, window_bounds = array<i64: 8, 16>}]} {
    %c0 = arith.constant 0 : index
    %c0_0 = arith.constant 0 : index
    %0 = vector.load %arg1[%c0, %c0_0] : memref<8x32xf32, #tpu.memory_space<vmem>>, vector<8x32xf32>
    %1 = arith.truncf %0 : vector<8x32xf32> to vector<8x32xbf16>
    %c0_1 = arith.constant 0 : index
    %c0_2 = arith.constant 0 : index
    %2 = vector.load %arg2[%c0_1, %c0_2] : memref<32x128xbf16, #tpu.memory_space<vmem>>, vector<32x128xbf16>
    %cst = arith.constant dense<0.000000e+00> : vector<8x128xf32>
    %3 = tpu.matmul %1, %2, %cst {dimension_numbers = #tpu.dot_dimension_numbers<[1], [0], [0], [1], [0, 0, 1, 1], [], []>} : vector<8x32xbf16>, vector<32x128xbf16>, vector<8x128xf32> -> vector<8x128xf32>
    %c0_3 = arith.constant 0 : index
    %c0_4 = arith.constant 0 : index
    %4 = vector.load %arg3[%c0_3, %c0_4] : memref<1x128xf32, #tpu.memory_space<vmem>>, vector<1x128xf32>
    %5 = vector.broadcast %4 : vector<1x128xf32> to vector<8x128xf32>
    %6 = arith.addf %3, %5 : vector<8x128xf32>
    %cst_5 = arith.constant 0.000000e+00 : f32
    %7 = vector.broadcast %cst_5 : f32 to vector<8x128xf32>
    %8 = arith.maximumf %6, %7 : vector<8x128xf32>
    %9 = arith.truncf %8 : vector<8x128xf32> to vector<8x128xbf16>
    %c0_6 = arith.constant 0 : index
    %c0_7 = arith.constant 0 : index
    %10 = vector.load %arg4[%c0_6, %c0_7] : memref<128x16xbf16, #tpu.memory_space<vmem>>, vector<128x16xbf16>
    %cst_8 = arith.constant dense<0.000000e+00> : vector<8x16xf32>
    %11 = tpu.matmul %9, %10, %cst_8 {dimension_numbers = #tpu.dot_dimension_numbers<[1], [0], [0], [1], [0, 0, 1, 1], [], []>} : vector<8x128xbf16>, vector<128x16xbf16>, vector<8x16xf32> -> vector<8x16xf32>
    %c0_9 = arith.constant 0 : index
    %c0_10 = arith.constant 0 : index
    %12 = vector.load %arg5[%c0_9, %c0_10] : memref<1x16xf32, #tpu.memory_space<vmem>>, vector<1x16xf32>
    %13 = vector.broadcast %12 : vector<1x16xf32> to vector<8x16xf32>
    %14 = arith.addf %11, %13 : vector<8x16xf32>
    %c0_11 = arith.constant 0 : index
    %c0_12 = arith.constant 0 : index
    %15 = vector.load %arg6[%c0_11, %c0_12] : memref<8x16xf32, #tpu.memory_space<vmem>>, vector<8x16xf32>
    tpu.vector_store %arg6[%c0_11, %c0_12], %14 {strides = array<i32>} : memref<8x16xf32, #tpu.memory_space<vmem>>, vector<8x16xf32>,
    return
  }
  func.func @transform_0(%arg0: i32) -> (i32, i32) {
    %c0_i32 = arith.constant 0 : i32
    %c0_i32_0 = arith.constant 0 : i32
    return %arg0, %c0_i32 : i32, i32
  }
  func.func @transform_1(%arg0: i32) -> (i32, i32) {
    %c0_i32 = arith.constant 0 : i32
    %c0_i32_0 = arith.constant 0 : i32
    %c0_i32_1 = arith.constant 0 : i32
    return %c0_i32, %c0_i32_0 : i32, i32
  }
  func.func @transform_2(%arg0: i32) -> (i32, i32) {
    %c0_i32 = arith.constant 0 : i32
    %c0_i32_0 = arith.constant 0 : i32
    %c0_i32_1 = arith.constant 0 : i32
    return %c0_i32, %c0_i32_0 : i32, i32
  }
  func.func @transform_3(%arg0: i32) -> (i32, i32) {
    %c0_i32 = arith.constant 0 : i32
    %c0_i32_0 = arith.constant 0 : i32
    %c0_i32_1 = arith.constant 0 : i32
    return %c0_i32, %c0_i32_0 : i32, i32
  }
  func.func @transform_4(%arg0: i32) -> (i32, i32) {
    %c0_i32 = arith.constant 0 : i32
    %c0_i32_0 = arith.constant 0 : i32
    %c0_i32_1 = arith.constant 0 : i32
    return %c0_i32, %c0_i32_0 : i32, i32
  }
  func.func @transform_5(%arg0: i32) -> (i32, i32) {
    %c0_i32 = arith.constant 0 : i32
    %c0_i32_0 = arith.constant 0 : i32
    return %arg0, %c0_i32 : i32, i32
  }
}

</mosaic_0001>

<llo_original>
// kernel: simple_neuranet_forward.1
$region0: #{simple_neuranet_forward.1}
  #allocation0 [shape = 'u32[]', space=smem, size = 0x4, offset = 0x4, fixed_abs, tag = 'smem constant byte address 0x4 - core index']
  #allocation1 [shape = 'u32[144,128]{1,0:T(1,128)}', space=vmem, size = 0x12000, scoped, tag = 'internal scratch']
  %s0 = inlined_call_operand.vmem [shape: f32[8,32], index: 0, kind: input, shape index: {}]
  %s1 = inlined_call_operand.vmem [shape: bf16[32,128], index: 1, kind: input, shape index: {}]
  %s2 = inlined_call_operand.vmem [shape: f32[1,128], index: 2, kind: input, shape index: {}]
  %s3 = inlined_call_operand.vmem [shape: bf16[128,16], index: 3, kind: input, shape index: {}]
  %s4 = inlined_call_operand.vmem [shape: f32[1,16], index: 4, kind: input, shape index: {}]
  %s5 = inlined_call_operand.hbm [shape: f32[8,16], index: 5, kind: output, shape index: {}]
  %s6 = sld [smem:[#allocation0]]
  $region30: #{simple_neuranet_forward.1} parent=0
    _
  %s8 = ssub.s32 1, %s6
  %s9 = scalar_select 0, %s8, %s6
  $region1: #{simple_neuranet_forward.1} parent=0
    #allocation2 [shape = 'u8[4096]{0}', space=vmem, size = 0x1000, scoped, tag = 'output window, operand 0, single buffered']
    #allocation3 [shape = 's32[1]{0}', space=sflag, size = 0x4, scoped, tag = 'scoped memory for simple_neuranet_forward.1']
    %10 = vsyncpa [#allocation3], 0
    // Predicated region
    $region2: #{simple_neuranet_forward.1} parent=1 // pred_check
      _
    $region3: #{simple_neuranet_forward.1} parent=1 // pred_check_branch
      %12 = sbr.rel (0) target = $region5
    $region4: #{simple_neuranet_forward.1} parent=1 // pred_region
      _
    $region5: #{simple_neuranet_forward.1} parent=1 // pred_fallthru
      _
    // Predicated region
    $region6: #{simple_neuranet_forward.1} parent=1 // pred_check
      _
    $region7: #{simple_neuranet_forward.1} parent=1 // pred_check_branch
      %14 = sbr.rel (0) target = $region9
    $region8: #{simple_neuranet_forward.1} parent=1 // pred_region
      _
    $region9: #{simple_neuranet_forward.1} parent=1 // pred_fallthru
      _
    // Predicated region
    $region10: #{simple_neuranet_forward.1} parent=1 // pred_check
      _
    $region11: #{simple_neuranet_forward.1} parent=1 // pred_check_branch
      %16 = sbr.rel (0) target = $region13
    $region12: #{simple_neuranet_forward.1} parent=1 // pred_region
      _
    $region13: #{simple_neuranet_forward.1} parent=1 // pred_fallthru
      _
    // Predicated region
    $region14: #{simple_neuranet_forward.1} parent=1 // pred_check
      _
    $region15: #{simple_neuranet_forward.1} parent=1 // pred_check_branch
      %18 = sbr.rel (0) target = $region17
    $region16: #{simple_neuranet_forward.1} parent=1 // pred_region
      _
    $region17: #{simple_neuranet_forward.1} parent=1 // pred_fallthru
      _
    // Predicated region
    $region18: #{simple_neuranet_forward.1} parent=1 // pred_check
      _
    $region19: #{simple_neuranet_forward.1} parent=1 // pred_check_branch
      %20 = sbr.rel (0) target = $region21
    $region20: #{simple_neuranet_forward.1} parent=1 // pred_region
      _
    $region21: #{simple_neuranet_forward.1} parent=1 // pred_fallthru
      _
    %v22 = vld [vmem:[%s0] sm:$0xff]
    %v23 = vpack.c.bf16 %v22, %v22
    %v24 = vld [vmem:[%s1] sm:$0xf]
    %v25 = vld [vmem:[%s1 + $0x4] sm:$0xf]
    %v26 = vld [vmem:[%s1 + $0x8] sm:$0xf]
    %v27 = vld [vmem:[%s1 + $0xc] sm:$0xf]
    %v28 = vld [vmem:[%s2] sm:$0x1]
    %v30 = vlaneseq
    %v31 = vshrl.u32 %v30, 7
    %v32 = vsub.s32 0, %v31
    %v33 = vrot.slane %v28, %v32
    %v39 = vunpack.c.l.b16 %v24
    %v40 = vunpack.c.l.b16 %v25
    %v41 = vunpack.c.l.b16 %v26
    %v42 = vunpack.c.l.b16 %v27
    %v43 = vpack.c.b16 %v40, %v39
    %v44 = vpack.c.b16 %v42, %v41
    %vm47 = vcmask 261120
    %v49 = vsel %vm47, %v23, 0
    %51 = vmatprep.subr.bf16.mxu0 0
    %52 = vmatpush1.bf16.msra.mxu0 %v43
    %53 = vmatprep.subr.bf16.mxu0 0
    %54 = vmatpush1.bf16.msra.mxu0 %v44
    %55 = vmatprep.subr.bf16.mxu0 0
    %56 = vmatpush1.bf16.msra.mxu0 0
    %57 = vmatprep.subr.bf16.mxu0 0
    %58 = vmatpush1.bf16.msra.mxu0 0
    %59 = vmatprep.subr.bf16.mxu0 0
    %60 = vmatpush1.bf16.msra.mxu0 0
    %61 = vmatprep.subr.bf16.mxu0 0
    %62 = vmatpush1.bf16.msra.mxu0 0
    %63 = vmatprep.subr.bf16.mxu0 0
    %64 = vmatpush1.bf16.msra.mxu0 0
    %65 = vmatprep.subr.bf16.mxu0 0
    %66 = vmatpush1.bf16.msra.mxu0 0
    %67 = vmatprep.subr.bf16.mxu0 0
    %68 = vmatpush1.bf16.msra.mxu0 0
    %69 = vmatprep.subr.bf16.mxu0 0
    %70 = vmatpush1.bf16.msra.mxu0 0
    %71 = vmatprep.subr.bf16.mxu0 0
    %72 = vmatpush1.bf16.msra.mxu0 0
    %73 = vmatprep.subr.bf16.mxu0 0
    %74 = vmatpush1.bf16.msra.mxu0 0
    %75 = vmatprep.subr.bf16.mxu0 0
    %76 = vmatpush1.bf16.msra.mxu0 0
    %77 = vmatprep.subr.bf16.mxu0 0
    %78 = vmatpush1.bf16.msra.mxu0 0
    %79 = vmatprep.subr.bf16.mxu0 0
    %80 = vmatpush1.bf16.msra.mxu0 0
    %81 = vmatprep.subr.bf16.mxu0 0
    %82 = vmatpush1.bf16.msra.mxu0 0
    %83 = vmatprep.mubr.bf16.mxu0 0
    %84 = vmatmul.mubr.bf16.gmra.mrb[0].mxu0 %v49
    %v85 = vpop.f32.mrb[0].mxu0
    %v86 = vadd.f32 %v33, %v85
    %v87 = vpop.f32.mrb[0].mxu0
    %v88 = vpop.f32.mrb[0].mxu0
    %v89 = vpop.f32.mrb[0].mxu0
    %90 = vdwg.mxu0
    %v91 = vmax.f32 %v86, 0.0
    %v92 = vpack.c.bf16 %v91, %v91
    %v93 = vld [vmem:[%s3] sm:$0xf]
    %v94 = vld [vmem:[%s3 + $0x4] sm:$0xf]
    %v95 = vld [vmem:[%s3 + $0x8] sm:$0xf]
    %v96 = vld [vmem:[%s3 + $0xc] sm:$0xf]
    %v97 = vld [vmem:[%s3 + $0x10] sm:$0xf]
    %v98 = vld [vmem:[%s3 + $0x14] sm:$0xf]
    %v99 = vld [vmem:[%s3 + $0x18] sm:$0xf]
    %v100 = vld [vmem:[%s3 + $0x1c] sm:$0xf]
    %v101 = vld [vmem:[%s3 + $0x20] sm:$0xf]
    %v102 = vld [vmem:[%s3 + $0x24] sm:$0xf]
    %v103 = vld [vmem:[%s3 + $0x28] sm:$0xf]
    %v104 = vld [vmem:[%s3 + $0x2c] sm:$0xf]
    %v105 = vld [vmem:[%s3 + $0x30] sm:$0xf]
    %v106 = vld [vmem:[%s3 + $0x34] sm:$0xf]
    %v107 = vld [vmem:[%s3 + $0x38] sm:$0xf]
    %v108 = vld [vmem:[%s3 + $0x3c] sm:$0xf]
    %v109 = vld [vmem:[%s4] sm:$0x1]
    %v111 = vlaneseq
    %v112 = vshrl.u32 %v111, 7
    %v113 = vsub.s32 0, %v112
    %v114 = vrot.slane %v109, %v113
    %v132 = vunpack.c.l.b16 %v93
    %v133 = vunpack.c.l.b16 %v94
    %v134 = vunpack.c.l.b16 %v95
    %v135 = vunpack.c.l.b16 %v96
    %v136 = vunpack.c.l.b16 %v97
    %v137 = vunpack.c.l.b16 %v98
    %v138 = vunpack.c.l.b16 %v99
    %v139 = vunpack.c.l.b16 %v100
    %v140 = vunpack.c.l.b16 %v101
    %v141 = vunpack.c.l.b16 %v102
    %v142 = vunpack.c.l.b16 %v103
    %v143 = vunpack.c.l.b16 %v104
    %v144 = vunpack.c.l.b16 %v105
    %v145 = vunpack.c.l.b16 %v106
    %v146 = vunpack.c.l.b16 %v107
    %v147 = vunpack.c.l.b16 %v108
    %v148 = vpack.c.b16 %v133, %v132
    %v149 = vpack.c.b16 %v135, %v134
    %v150 = vpack.c.b16 %v137, %v136
    %v151 = vpack.c.b16 %v139, %v138
    %v152 = vpack.c.b16 %v141, %v140
    %v153 = vpack.c.b16 %v143, %v142
    %v154 = vpack.c.b16 %v145, %v144
    %v155 = vpack.c.b16 %v147, %v146
    %164 = vmatprep.subr.bf16.mxu0 0
    %165 = vmatpush1.bf16.msra.mxu0 %v148
    %166 = vmatprep.subr.bf16.mxu0 0
    %167 = vmatpush1.bf16.msra.mxu0 %v149
    %168 = vmatprep.subr.bf16.mxu0 0
    %169 = vmatpush1.bf16.msra.mxu0 %v150
    %170 = vmatprep.subr.bf16.mxu0 0
    %171 = vmatpush1.bf16.msra.mxu0 %v151
    %172 = vmatprep.subr.bf16.mxu0 0
    %173 = vmatpush1.bf16.msra.mxu0 %v152
    %174 = vmatprep.subr.bf16.mxu0 0
    %175 = vmatpush1.bf16.msra.mxu0 %v153
    %176 = vmatprep.subr.bf16.mxu0 0
    %177 = vmatpush1.bf16.msra.mxu0 %v154
    %178 = vmatprep.subr.bf16.mxu0 0
    %179 = vmatpush1.bf16.msra.mxu0 %v155
    %180 = vmatprep.subr.bf16.mxu0 0
    %181 = vmatpush1.bf16.msra.mxu0 0
    %182 = vmatprep.subr.bf16.mxu0 0
    %183 = vmatpush1.bf16.msra.mxu0 0
    %184 = vmatprep.subr.bf16.mxu0 0
    %185 = vmatpush1.bf16.msra.mxu0 0
    %186 = vmatprep.subr.bf16.mxu0 0
    %187 = vmatpush1.bf16.msra.mxu0 0
    %188 = vmatprep.subr.bf16.mxu0 0
    %189 = vmatpush1.bf16.msra.mxu0 0
    %190 = vmatprep.subr.bf16.mxu0 0
    %191 = vmatpush1.bf16.msra.mxu0 0
    %192 = vmatprep.subr.bf16.mxu0 0
    %193 = vmatpush1.bf16.msra.mxu0 0
    %194 = vmatprep.subr.bf16.mxu0 0
    %195 = vmatpush1.bf16.msra.mxu0 0
    %196 = vmatprep.mubr.bf16.mxu0 0
    %197 = vmatmul.mubr.bf16.gmra.mrb[0].mxu0 %v92
    %v198 = vpop.f32.mrb[0].mxu0
    %v199 = vadd.f32 %v114, %v198
    %v200 = vpop.f32.mrb[0].mxu0
    %v201 = vpop.f32.mrb[0].mxu0
    %v202 = vpop.f32.mrb[0].mxu0
    %203 = vdwg.mxu0
    %vm204 = vcmask 130048
    %205 = vst.msk [vmem:[#allocation2] sm:$0xff] %vm204, %v199
    // Predicated region
    $region22: #{simple_neuranet_forward.1} parent=1 // pred_check
      _
    $region23: #{simple_neuranet_forward.1} parent=1 // pred_check_branch
      %207 = sbr.rel (0) target = $region25
    $region24: #{simple_neuranet_forward.1} parent=1 // pred_region
      %s209 = ssub.s32 128, 128
      %210 = vsyncadd [#allocation3], %s209
      %s212 = sshll.u32 [#allocation2], 4
      %s213 = int_to_ptr.vmem [resolvable:$true] %s212
      %215 = dma.vmem_to_hbm [thread:$0]  %s213, 128, %s5, [#allocation3]
    $region25: #{simple_neuranet_forward.1} parent=1 // pred_fallthru
      _
    // Predicated region
    $region26: #{simple_neuranet_forward.1} parent=1 // pred_check
      _
    $region27: #{simple_neuranet_forward.1} parent=1 // pred_check_branch
      %217 = sbr.rel (0) target = $region29
    $region28: #{simple_neuranet_forward.1} parent=1 // pred_region
      %218 = dma.done [#allocation3], 128
    $region29: #{simple_neuranet_forward.1} parent=1 // pred_fallthru
      _
    %219 = vsyncpa [#allocation3], 1

</llo_original>
